<compile_context>
chip_gen: v5e
topology: v5e:2x2
jax: 0.10.0
libtpu: 0.0.40
codegen_flags: <defaults>
</compile_context>

<pallas_src>
import jax
import jax.numpy as jnp
from jax.experimental import pallas as pl
from jax.experimental.pallas import tpu as pltpu


def autorec_kernel(pu_ref, qi_ref, bias_ref, out_ref):
    # pu_ref, qi_ref: (tb, K); bias_ref, out_ref: (tb, 1) f32
    pu = pu_ref[...].astype(jnp.float32)
    qi = qi_ref[...].astype(jnp.float32)
    dot = jnp.sum(pu * qi, axis=1, keepdims=True)          # (tb, 1) f32
    out_ref[...] = dot + bias_ref[...]


def _round_up(x, m):
    return (x + m - 1) // m * m


def autorec_forward(rows, P, Q, b_u, b_i, *, b=3.2, factor_dtype=None,
                    target_block_bytes=2 * 1024 * 1024, max_tb=2048):
    """Pallas implementation of AutoRec.forward.

    rows: (B, >=2) integer array; col 0 = user idx, col 1 = item idx.
    Returns (B,) float32.
    """
    rows = rows.astype(jnp.int32)
    u = rows[:, 0]
    i = rows[:, 1]
    B = u.shape[0]
    K = P.shape[1]

    dtype = jnp.dtype(factor_dtype) if factor_dtype is not None else jnp.dtype(jnp.float32)
    bpe = dtype.itemsize

    # --- Tile-size selection: biggest batch tile whose (tb, K) block is ~2 MiB,
    #     capped at 2048 rows, rounded to a sublane multiple, capped by B.
    tb = target_block_bytes // max(1, K * bpe)
    tb = max(8, min(int(tb), int(max_tb)))
    tb = (tb // 8) * 8
    tb = min(tb, _round_up(B, 8))
    B_pad = _round_up(B, tb)
    num_tiles = B_pad // tb

    # --- Pad indices (ragged batch support), then gather + fuse biases in JAX.
    pad = B_pad - B
    if pad:
        zeros = jnp.zeros((pad,), jnp.int32)
        u = jnp.concatenate([u, zeros])
        i = jnp.concatenate([i, zeros])

    Pu = P[u, :].astype(dtype)                                   # (B_pad, K)
    Qi = Q[i, :].astype(dtype)                                   # (B_pad, K)
    bias = (b_u[u] + b_i[i]).astype(jnp.float32) + jnp.float32(b)
    bias = bias[:, None]                                         # (B_pad, 1)

    # --- Explicit VMEM budget: 2 factor inputs x 2 pipeline buffers, plus the
    #     lane-padded (tb, 1) bias/output buffers. Keep >= defaults, < v7x phys.
    factor_block_bytes = tb * K * bpe
    small_block_bytes = tb * 128 * 4      # (tb, 1) f32 pads lanes to 128 in VMEM
    vmem_needed = 2 * 2 * factor_block_bytes + 2 * 2 * small_block_bytes
    vmem_limit = int(min(max(2 * vmem_needed, 32 * 1024 * 1024), 56 * 1024 * 1024))

    out = pl.pallas_call(
        autorec_kernel,
        out_shape=jax.ShapeDtypeStruct((B_pad, 1), jnp.float32),
        grid_spec=pltpu.PrefetchScalarGridSpec(
            num_scalar_prefetch=0,
            grid=(num_tiles,),
            in_specs=[
                pl.BlockSpec((tb, K), lambda m: (m, 0)),
                pl.BlockSpec((tb, K), lambda m: (m, 0)),
                pl.BlockSpec((tb, 1), lambda m: (m, 0)),
            ],
            out_specs=pl.BlockSpec((tb, 1), lambda m: (m, 0)),
        ),
        compiler_params=pltpu.CompilerParams(
            dimension_semantics=("parallel",),
            vmem_limit_bytes=vmem_limit,
        ),
    )(Pu, Qi, bias)

    return out[:B, 0]


def autorec_forward_ref(rows, P, Q, b_u, b_i, *, b=3.2):
    rows = rows.astype(jnp.int32)
    u, i = rows[:, 0], rows[:, 1]
    return jnp.sum(P[u, :] * Q[i, :], axis=1) + b_u[u] + b_i[i] + jnp.float32(b)


if __name__ == "__main__":
    # Small, deterministic synthetic setup consistent with AutoRec.__init__
    # (hidden_size default is 256 in the PyTorch module).
    num_users, num_items, hidden = 89, 123, 256
    b_const = 3.2

    key = jax.random.PRNGKey(0)
    k_bu, k_bi, k_P, k_Q, k_a, k_b2 = jax.random.split(key, 6)

    b_u = jax.random.normal(k_bu, (num_users,), dtype=jnp.float32)
    b_i = jax.random.normal(k_bi, (num_items,), dtype=jnp.float32)
    P = jax.random.normal(k_P, (num_users, hidden), dtype=jnp.float32)
    Q = jax.random.normal(k_Q, (num_items, hidden), dtype=jnp.float32)

    def make_rows(k, batch):
        ku, ki, kr = jax.random.split(k, 3)
        users = jax.random.randint(ku, (batch, 1), 0, num_users)
        items = jax.random.randint(ki, (batch, 1), 0, num_items)
        ratings = jax.random.randint(kr, (batch, 1), 1, 6)
        return jnp.concatenate([users, items, ratings], axis=1).astype(jnp.int32)

    # Case 1: small ragged batch (exercises padding, single big tile).
    rows_a = make_rows(k_a, 37)
    out_a = jax.block_until_ready(autorec_forward(rows_a, P, Q, b_u, b_i, b=b_const))
    ref_a = autorec_forward_ref(rows_a, P, Q, b_u, b_i, b=b_const)
    assert out_a.shape == (37,)
    assert jnp.allclose(out_a, ref_a, atol=1e-3, rtol=1e-3)

    # Case 2: larger ragged batch with several grid steps (multi-tile + padding).
    rows_b = make_rows(k_b2, 1000)
    out_b = jax.block_until_ready(
        autorec_forward(rows_b, P, Q, b_u, b_i, b=b_const, max_tb=256))
    ref_b = autorec_forward_ref(rows_b, P, Q, b_u, b_i, b=b_const)
    assert out_b.shape == (1000,)
    assert jnp.allclose(out_b, ref_b, atol=1e-3, rtol=1e-3)

    print("KERNEL_OK")
</pallas_src>

<mosaic_0001>
module attributes {stable_mosaic.version = 11 : i64} {
  func.func @autorec_kernel(%arg0: i32, %arg1: memref<40x256xf32, #tpu.memory_space<vmem>>, %arg2: memref<40x256xf32, #tpu.memory_space<vmem>>, %arg3: memref<40x1xf32, #tpu.memory_space<vmem>>, %arg4: memref<40x1xf32, #tpu.memory_space<vmem>>) attributes {dimension_semantics = [#tpu.dimension_semantics<parallel>], iteration_bounds = array<i64: 1>, scalar_prefetch = 0 : i64, scratch_operands = 0 : i64, tpu.core_type = #tpu.core_type<tc>, window_params = [{transform_indices = @transform_0, window_bounds = array<i64: 40, 256>}, {transform_indices = @transform_1, window_bounds = array<i64: 40, 256>}, {transform_indices = @transform_2, window_bounds = array<i64: 40, 1>}, {transform_indices = @transform_3, window_bounds = array<i64: 40, 1>}]} {
    %c0 = arith.constant 0 : index
    %c0_0 = arith.constant 0 : index
    %0 = vector.load %arg1[%c0, %c0_0] : memref<40x256xf32, #tpu.memory_space<vmem>>, vector<40x256xf32>
    %c0_1 = arith.constant 0 : index
    %c0_2 = arith.constant 0 : index
    %1 = vector.load %arg2[%c0_1, %c0_2] : memref<40x256xf32, #tpu.memory_space<vmem>>, vector<40x256xf32>
    %2 = arith.mulf %0, %1 : vector<40x256xf32>
    %cst = arith.constant dense<0.000000e+00> : vector<40xf32>
    %3 = vector.multi_reduction <add>, %2, %cst [1] : vector<40x256xf32> to vector<40xf32>
    %4 = vector.shape_cast %3 : vector<40xf32> to vector<40x1xf32>
    %c0_3 = arith.constant 0 : index
    %c0_4 = arith.constant 0 : index
    %5 = vector.load %arg3[%c0_3, %c0_4] : memref<40x1xf32, #tpu.memory_space<vmem>>, vector<40x1xf32>
    %6 = arith.addf %4, %5 : vector<40x1xf32>
    %c0_5 = arith.constant 0 : index
    %c0_6 = arith.constant 0 : index
    %7 = vector.load %arg4[%c0_5, %c0_6] : memref<40x1xf32, #tpu.memory_space<vmem>>, vector<40x1xf32>
    tpu.vector_store %arg4[%c0_5, %c0_6], %6 {strides = array<i32>} : memref<40x1xf32, #tpu.memory_space<vmem>>, vector<40x1xf32>,
    return
  }
  func.func @transform_0(%arg0: i32) -> (i32, i32) {
    %c0_i32 = arith.constant 0 : i32
    %c0_i32_0 = arith.constant 0 : i32
    return %arg0, %c0_i32 : i32, i32
  }
  func.func @transform_1(%arg0: i32) -> (i32, i32) {
    %c0_i32 = arith.constant 0 : i32
    %c0_i32_0 = arith.constant 0 : i32
    return %arg0, %c0_i32 : i32, i32
  }
  func.func @transform_2(%arg0: i32) -> (i32, i32) {
    %c0_i32 = arith.constant 0 : i32
    %c0_i32_0 = arith.constant 0 : i32
    return %arg0, %c0_i32 : i32, i32
  }
  func.func @transform_3(%arg0: i32) -> (i32, i32) {
    %c0_i32 = arith.constant 0 : i32
    %c0_i32_0 = arith.constant 0 : i32
    return %arg0, %c0_i32 : i32, i32
  }
}

</mosaic_0001>

<llo_original>
// kernel: tpu_custom_call.1
$region0: #{tpu_custom_call.1}
  #allocation0 [shape = 'u32[]', space=smem, size = 0x4, offset = 0x4, fixed_abs, tag = 'smem constant byte address 0x4 - core index']
  #allocation1 [shape = 'u32[72,128]{1,0:T(1,128)}', space=vmem, size = 0x9000, scoped, tag = 'internal scratch']
  %s0 = inlined_call_operand.hbm [shape: f32[40,256], index: 0, kind: input, shape index: {}]
  %s1 = inlined_call_operand.hbm [shape: f32[40,256], index: 1, kind: input, shape index: {}]
  %s2 = inlined_call_operand.vmem [shape: f32[40,1], index: 2, kind: input, shape index: {}]
  %s3 = inlined_call_operand.vmem [shape: f32[40,1], index: 3, kind: output, shape index: {}]
  %s4 = sld [smem:[#allocation0]]
  $region30: #{tpu_custom_call.1} parent=0
    _
  %s6 = ssub.s32 1, %s4
  %s7 = scalar_select 0, %s6, %s4
  $region1: #{tpu_custom_call.1} parent=0
    #allocation2 [shape = 'u8[40960]{0}', space=vmem, size = 0xa000, scoped, tag = 'input window, operand 0, single buffered']
    #allocation3 [shape = 's32[1]{0}', space=sflag, size = 0x4, scoped, tag = 'scoped memory for tpu_custom_call.1']
    #allocation4 [shape = 'u8[40960]{0}', space=vmem, size = 0xa000, scoped, tag = 'input window, operand 1, single buffered']
    #allocation5 [shape = 's32[1]{0}', space=sflag, size = 0x4, scoped, tag = 'scoped memory for tpu_custom_call.1']
    %8 = vsyncpa [#allocation3], 0
    %9 = vsyncpa [#allocation5], 0
    // Predicated region
    $region2: #{tpu_custom_call.1} parent=1 // pred_check
      _
    $region3: #{tpu_custom_call.1} parent=1 // pred_check_branch
      %11 = sbr.rel (0) target = $region5
    $region4: #{tpu_custom_call.1} parent=1 // pred_region
      %13 = vsyncadd [#allocation3], 0
      %s14 = sshll.u32 %s0, 4
      %s15 = int_to_ptr.hbm [resolvable:$true] %s14
      %s16 = sshll.u32 [#allocation2], 4
      %s17 = int_to_ptr.vmem [resolvable:$true] %s16
      %22 = dma.hbm_to_vmem [thread:$0]  %s15, 1280, %s17, [#allocation3], 256, 256, 16
    $region5: #{tpu_custom_call.1} parent=1 // pred_fallthru
      _
    // Predicated region
    $region6: #{tpu_custom_call.1} parent=1 // pred_check
      _
    $region7: #{tpu_custom_call.1} parent=1 // pred_check_branch
      %24 = sbr.rel (0) target = $region9
    $region8: #{tpu_custom_call.1} parent=1 // pred_region
      %26 = vsyncadd [#allocation5], 0
      %s27 = sshll.u32 %s1, 4
      %s28 = int_to_ptr.hbm [resolvable:$true] %s27
      %s29 = sshll.u32 [#allocation4], 4
      %s30 = int_to_ptr.vmem [resolvable:$true] %s29
      %35 = dma.hbm_to_vmem [thread:$0]  %s28, 1280, %s30, [#allocation5], 256, 256, 16
    $region9: #{tpu_custom_call.1} parent=1 // pred_fallthru
      _
    // Predicated region
    $region10: #{tpu_custom_call.1} parent=1 // pred_check
      _
    $region11: #{tpu_custom_call.1} parent=1 // pred_check_branch
      %37 = sbr.rel (0) target = $region13
    $region12: #{tpu_custom_call.1} parent=1 // pred_region
      _
    $region13: #{tpu_custom_call.1} parent=1 // pred_fallthru
      _
    // Predicated region
    $region14: #{tpu_custom_call.1} parent=1 // pred_check
      _
    $region15: #{tpu_custom_call.1} parent=1 // pred_check_branch
      %39 = sbr.rel (0) target = $region17
    $region16: #{tpu_custom_call.1} parent=1 // pred_region
      %41 = dma.done [#allocation3], 1280
    $region17: #{tpu_custom_call.1} parent=1 // pred_fallthru
      _
    // Predicated region
    $region18: #{tpu_custom_call.1} parent=1 // pred_check
      _
    $region19: #{tpu_custom_call.1} parent=1 // pred_check_branch
      %43 = sbr.rel (0) target = $region21
    $region20: #{tpu_custom_call.1} parent=1 // pred_region
      %45 = dma.done [#allocation5], 1280
    $region21: #{tpu_custom_call.1} parent=1 // pred_fallthru
      _
    %v46 = vld [vmem:[#allocation2] sm:$0xff]
    %v47 = vld [vmem:[#allocation2 + $0x8] sm:$0xff]
    %v48 = vld [vmem:[#allocation2 + $0x10] sm:$0xff]
    %v49 = vld [vmem:[#allocation2 + $0x18] sm:$0xff]
    %v50 = vld [vmem:[#allocation2 + $0x20] sm:$0xff]
    %v51 = vld [vmem:[#allocation2 + $0x28] sm:$0xff]
    %v52 = vld [vmem:[#allocation2 + $0x30] sm:$0xff]
    %v53 = vld [vmem:[#allocation2 + $0x38] sm:$0xff]
    %v54 = vld [vmem:[#allocation2 + $0x40] sm:$0xff]
    %v55 = vld [vmem:[#allocation2 + $0x48] sm:$0xff]
    %v56 = vld [vmem:[#allocation4] sm:$0xff]
    %v57 = vld [vmem:[#allocation4 + $0x8] sm:$0xff]
    %v58 = vld [vmem:[#allocation4 + $0x10] sm:$0xff]
    %v59 = vld [vmem:[#allocation4 + $0x18] sm:$0xff]
    %v60 = vld [vmem:[#allocation4 + $0x20] sm:$0xff]
    %v61 = vld [vmem:[#allocation4 + $0x28] sm:$0xff]
    %v62 = vld [vmem:[#allocation4 + $0x30] sm:$0xff]
    %v63 = vld [vmem:[#allocation4 + $0x38] sm:$0xff]
    %v64 = vld [vmem:[#allocation4 + $0x40] sm:$0xff]
    %v65 = vld [vmem:[#allocation4 + $0x48] sm:$0xff]
    %v66 = vmul.f32 %v46, %v56
    %v67 = vmul.f32 %v47, %v57
    %v68 = vmul.f32 %v48, %v58
    %v69 = vmul.f32 %v49, %v59
    %v70 = vmul.f32 %v50, %v60
    %v71 = vmul.f32 %v51, %v61
    %v72 = vmul.f32 %v52, %v62
    %v73 = vmul.f32 %v53, %v63
    %v74 = vmul.f32 %v54, %v64
    %v75 = vmul.f32 %v55, %v65
    %v76 = vadd.f32 %v66, %v67
    %77 = vadd.xlane.f32.xlu0 %v76
    %v78 = vpop.xlane.xlu0 %77
    %v79 = vadd.f32 %v68, %v69
    %80 = vadd.xlane.f32.xlu0 %v79
    %v81 = vpop.xlane.xlu0 %80
    %v82 = vadd.f32 %v70, %v71
    %83 = vadd.xlane.f32.xlu0 %v82
    %v84 = vpop.xlane.xlu0 %83
    %v85 = vadd.f32 %v72, %v73
    %86 = vadd.xlane.f32.xlu0 %v85
    %v87 = vpop.xlane.xlu0 %86
    %v88 = vadd.f32 %v74, %v75
    %89 = vadd.xlane.f32.xlu0 %v88
    %v90 = vpop.xlane.xlu0 %89
    %v91 = vld [vmem:[%s2] sm:$0xff]
    %v92 = vld [vmem:[%s2 + $0x8] sm:$0xff]
    %v93 = vld [vmem:[%s2 + $0x10] sm:$0xff]
    %v94 = vld [vmem:[%s2 + $0x18] sm:$0xff]
    %v95 = vld [vmem:[%s2 + $0x20] sm:$0xff]
    %v96 = vadd.f32 %v78, %v91
    %v97 = vadd.f32 %v81, %v92
    %v98 = vadd.f32 %v84, %v93
    %v99 = vadd.f32 %v87, %v94
    %v100 = vadd.f32 %v90, %v95
    %vm101 = vcmask 7168
    %102 = vst.msk [vmem:[%s3] sm:$0xff] %vm101, %v96
    %103 = vst.msk [vmem:[%s3 + $0x8] sm:$0xff] %vm101, %v97
    %104 = vst.msk [vmem:[%s3 + $0x10] sm:$0xff] %vm101, %v98
    %105 = vst.msk [vmem:[%s3 + $0x18] sm:$0xff] %vm101, %v99
    %106 = vst.msk [vmem:[%s3 + $0x20] sm:$0xff] %vm101, %v100
    // Predicated region
    $region22: #{tpu_custom_call.1} parent=1 // pred_check
      _
    $region23: #{tpu_custom_call.1} parent=1 // pred_check_branch
      %108 = sbr.rel (0) target = $region25
    $region24: #{tpu_custom_call.1} parent=1 // pred_region
      _
    $region25: #{tpu_custom_call.1} parent=1 // pred_fallthru
      _
    // Predicated region
    $region26: #{tpu_custom_call.1} parent=1 // pred_check
      _
    $region27: #{tpu_custom_call.1} parent=1 // pred_check_branch
      %110 = sbr.rel (0) target = $region29
    $region28: #{tpu_custom_call.1} parent=1 // pred_region
      _
    $region29: #{tpu_custom_call.1} parent=1 // pred_fallthru
      _
    %111 = vsyncpa [#allocation3], 1
    %112 = vsyncpa [#allocation5], 1

</llo_original>
